<compile_context>
chip_gen: v5e
topology: v5e:2x2
jax: 0.10.0
libtpu: 0.0.40
codegen_flags: <defaults>
</compile_context>

<pallas_src>
import jax
import jax.numpy as jnp
from jax.experimental import pallas as pl
from jax.experimental.pallas import tpu as pltpu

# ----------------------------- sizes (small) -----------------------------
B = 2            # batch
S = 8            # sequence length
H_TXT = 32       # "bert hidden size" (small stand-in)
VOCAB = 64
IMG_C = 3        # image channels (NCHW input)
IMG_HW = 16      # spatial size
P = IMG_HW * IMG_HW   # 256 spatial positions -> lane axis
C_MID = 32       # intermediate conv channels
C_IMG = 64       # image feature dim (stand-in for 2048)
G = 4            # len(GENRES)
FEAT = H_TXT + C_IMG    # 96

# ---------------- param slab layout ([PARAM_ROWS, 128] f32) ----------------
R_EMB = 0                      # emb_table [VOCAB, H_TXT]      rows   0:64,  cols 0:32
R_WBD = 64                     # block-diag [64, FEAT]          rows  64:128, cols 0:96
R_WCLS = 128                   # wcls [FEAT, G]                 rows 128:224, cols 0:4
R_WCT = 224                    # wc^T [C_MID, IMG_C]            rows 224:256, cols 0:3
COL_BC = 4                     # bc as a column [C_MID, 1]      rows 224:256, col  4
R_BBD = 256                    # [bp | bproj] row                row 256,     cols 0:96
R_BCLS = 257                   # bcls row                        row 257,     cols 0:4
R_PW = 258                     # pos_weight row                  row 258,     cols 0:4
PARAM_ROWS = 264

# ---------------- data slab layout ([8, 128] f32, per call) ----------------
DATA_ROWS = 8
D_IDS = 0          # input_ids (as f32)   rows 0:2, cols 0:8
D_MASK = B         # attention_mask       rows 2:4, cols 0:8
D_LBL = 2 * B      # labels               rows 4:6, cols 0:4

# ---------------- output slab ([8, 128] f32) -------------------------------
OUT_ROWS = 8
LOSS_ROW = 4       # loss scalar at [LOSS_ROW, 0]; logits at [0:B, 0:G]


def _softplus(z):
    # numerically stable softplus
    return jnp.maximum(z, 0.0) + jnp.log(1.0 + jnp.exp(-jnp.abs(z)))


# ----------------------------- fused kernel -------------------------------
def fused_kernel(data_ref,    # [8, 128] f32 : ids / mask / labels
                 img_ref,     # [IMG_C, B*P] f32 : lane-dense spatial
                 param_ref,   # [PARAM_ROWS, 128] f32 : packed weights
                 out_ref):    # [8, 128] f32 : logits + loss slab
    # ---- unpack tiny per-call data slab (single vreg load) ----
    data = data_ref[...]                                       # [8, 128]
    ids_f = data[D_IDS:D_IDS + B, 0:S]                         # [B, S]
    mask = data[D_MASK:D_MASK + B, 0:S]                        # [B, S]
    labels = data[D_LBL:D_LBL + B, 0:G]                        # [B, G]

    # ---- text branch: one-hot weighted sum (VPU) -> embedding dot (MXU) ----
    ids_i = ids_f.astype(jnp.int32)[:, :, None]                # [B, S, 1]
    iota_v = jax.lax.broadcasted_iota(jnp.int32, (B, S, VOCAB), 2)
    onehot = jnp.where(ids_i == iota_v, mask[:, :, None], 0.0)  # [B, S, VOCAB]
    weights = jnp.sum(onehot, axis=1)                           # [B, VOCAB]
    den = jnp.maximum(jnp.sum(mask, axis=1, keepdims=True), 1.0)
    weights = weights / den                                     # masked mean weights
    emb = param_ref[R_EMB:R_EMB + VOCAB, 0:H_TXT]               # [VOCAB, H_TXT]
    pooled_txt = jnp.dot(weights, emb,
                         preferred_element_type=jnp.float32)    # [B, H_TXT]

    # ---- image branch: pointwise conv on MXU + ReLU, pool via a 2nd contraction ----
    x = img_ref[...]                                            # [IMG_C, B*P]
    wct = param_ref[R_WCT:R_WCT + C_MID, 0:IMG_C]               # [C_MID, IMG_C]
    bc = param_ref[R_WCT:R_WCT + C_MID, COL_BC:COL_BC + 1]      # [C_MID, 1]
    h = jnp.maximum(jnp.dot(wct, x, preferred_element_type=jnp.float32) + bc,
                    0.0)                                        # [C_MID, B*P]
    # global-average-pool + per-batch split + transpose-to-rows in one MXU op
    col_i = jax.lax.broadcasted_iota(jnp.int32, (B, B * P), 1)
    row_i = jax.lax.broadcasted_iota(jnp.int32, (B, B * P), 0)
    lo = row_i * P
    sel = jnp.where((col_i >= lo) & (col_i < lo + P),
                    jnp.float32(1.0 / P), jnp.float32(0.0))     # [B, B*P]
    pooled_img = jax.lax.dot_general(
        sel, h, (((1,), (1,)), ((), ())),
        preferred_element_type=jnp.float32)                     # [B, C_MID]

    # ---- pooler + image projection fused: one block-diagonal matmul ----
    cat_pool = jnp.concatenate([pooled_txt, pooled_img], axis=1)   # [B, 64]
    w_bd = param_ref[R_WBD:R_WBD + H_TXT + C_MID, 0:FEAT]          # [64, FEAT]
    b_bd = param_ref[R_BBD:R_BBD + 1, 0:FEAT]                      # [1, FEAT]
    hidden = jnp.dot(cat_pool, w_bd,
                     preferred_element_type=jnp.float32) + b_bd    # [B, FEAT]
    fcol = jax.lax.broadcasted_iota(jnp.int32, (B, FEAT), 1)
    fused = jnp.where(fcol < H_TXT, jnp.tanh(hidden),
                      jnp.maximum(hidden, 0.0))                    # [txt | img_feat]

    # ---- classifier (dropout p=0.4 is identity in eval) ----
    wcls = param_ref[R_WCLS:R_WCLS + FEAT, 0:G]                 # [FEAT, G]
    bcls = param_ref[R_BCLS:R_BCLS + 1, 0:G]                    # [1, G]
    logits = jnp.dot(fused, wcls,
                     preferred_element_type=jnp.float32) + bcls  # [B, G]

    # ---- BCEWithLogitsLoss(pos_weight), reduction='mean' ----
    pw = param_ref[R_PW:R_PW + 1, 0:G]
    l = pw * labels * _softplus(-logits) + (1.0 - labels) * _softplus(logits)
    loss11 = jnp.mean(l, keepdims=True)                          # [1, 1]

    # ---- single padded output slab ----
    out_ref[...] = jnp.zeros((OUT_ROWS, 128), jnp.float32)
    out_ref[0:B, 0:G] = logits
    out_ref[LOSS_ROW:LOSS_ROW + 1, 0:1] = loss11


# ----------------------------- host-side packing ---------------------------
def pack_param_slab(p):
    slab = jnp.zeros((PARAM_ROWS, 128), jnp.float32)
    slab = slab.at[R_EMB:R_EMB + VOCAB, 0:H_TXT].set(p["emb_table"])
    # block-diagonal [wp 0; 0 wproj]
    slab = slab.at[R_WBD:R_WBD + H_TXT, 0:H_TXT].set(p["wp"])
    slab = slab.at[R_WBD + H_TXT:R_WBD + H_TXT + C_MID, H_TXT:FEAT].set(p["wproj"])
    slab = slab.at[R_WCLS:R_WCLS + FEAT, 0:G].set(p["wcls"])
    slab = slab.at[R_WCT:R_WCT + C_MID, 0:IMG_C].set(p["wc"].T)
    slab = slab.at[R_WCT:R_WCT + C_MID, COL_BC:COL_BC + 1].set(p["bc"].T)
    slab = slab.at[R_BBD, 0:H_TXT].set(p["bp"][0])
    slab = slab.at[R_BBD, H_TXT:FEAT].set(p["bproj"][0])
    slab = slab.at[R_BCLS, 0:G].set(p["bcls"][0])
    slab = slab.at[R_PW, 0:G].set(p["pos_weight"][0])
    return slab


# ----------------------------- wrapper -------------------------------------
def multimodal_forward(params, input_ids, attention_mask, image_nchw, labels=None):
    have_labels = labels is not None
    if labels is None:
        labels = jnp.zeros((B, G), jnp.float32)

    # Layout plumbing only: NCHW [B,C,H,W] -> [C, B*H*W] so spatial rides the lanes.
    img_cp = jnp.transpose(image_nchw, (1, 0, 2, 3)).reshape(IMG_C, B * P)
    img_cp = img_cp.astype(jnp.float32)

    # Per-call data slab (ids/mask/labels), lane-dense f32.
    data = jnp.zeros((DATA_ROWS, 128), jnp.float32)
    data = data.at[D_IDS:D_IDS + B, 0:S].set(input_ids.astype(jnp.float32))
    data = data.at[D_MASK:D_MASK + B, 0:S].set(attention_mask.astype(jnp.float32))
    data = data.at[D_LBL:D_LBL + B, 0:G].set(labels.astype(jnp.float32))

    param_slab = pack_param_slab(params)

    flops = 2 * (B * VOCAB * H_TXT            # embedding contraction
                 + C_MID * IMG_C * B * P      # pointwise conv
                 + B * (B * P) * C_MID        # pooling contraction
                 + B * (H_TXT + C_MID) * FEAT  # block-diag pooler/proj
                 + B * FEAT * G)              # classifier
    bytes_accessed = 4 * (data.size + img_cp.size + param_slab.size + OUT_ROWS * 128)
    cost = pl.CostEstimate(flops=flops,
                           transcendentals=B * FEAT + 4 * B * G,
                           bytes_accessed=bytes_accessed)

    out = pl.pallas_call(
        fused_kernel,
        out_shape=jax.ShapeDtypeStruct((OUT_ROWS, 128), jnp.float32),
        grid=(1,),                                   # B=2: one step; shard only at large B
        in_specs=[
            pl.BlockSpec((DATA_ROWS, 128), lambda i: (0, 0)),
            pl.BlockSpec((IMG_C, B * P), lambda i: (0, 0)),
            pl.BlockSpec((PARAM_ROWS, 128), lambda i: (0, 0)),
        ],
        out_specs=pl.BlockSpec((OUT_ROWS, 128), lambda i: (0, 0)),
        compiler_params=pltpu.CompilerParams(dimension_semantics=("arbitrary",)),
        cost_estimate=cost,
    )(data, img_cp, param_slab)

    logits = out[0:B, 0:G]
    if have_labels:
        return {"loss": out[LOSS_ROW, 0], "logits": logits}
    return {"logits": logits}


# ----------------------------- params ------------------------------------
def init_params(key):
    ks = jax.random.split(key, 8)
    s = 0.02
    return {
        "emb_table": s * jax.random.normal(ks[0], (VOCAB, H_TXT), jnp.float32),
        "wp": s * jax.random.normal(ks[1], (H_TXT, H_TXT), jnp.float32),
        "bp": jnp.zeros((1, H_TXT), jnp.float32),
        "wc": s * jax.random.normal(ks[2], (IMG_C, C_MID), jnp.float32),
        "bc": jnp.zeros((1, C_MID), jnp.float32),
        "wproj": s * jax.random.normal(ks[3], (C_MID, C_IMG), jnp.float32),
        "bproj": jnp.zeros((1, C_IMG), jnp.float32),
        "wcls": s * jax.random.normal(ks[4], (FEAT, G), jnp.float32),
        "bcls": jnp.zeros((1, G), jnp.float32),
        "pos_weight": jnp.full((1, G), 1.5, jnp.float32),
    }


if __name__ == "__main__":
    root = jax.random.PRNGKey(0)
    kp, k1, k2, k3 = jax.random.split(root, 4)
    params = init_params(kp)

    input_ids = jax.random.randint(k1, (B, S), 0, VOCAB)
    attention_mask = jnp.array([[1, 1, 1, 1, 1, 1, 1, 1],
                                [1, 1, 1, 1, 1, 0, 0, 0]], dtype=jnp.int32)
    image = jax.random.normal(k2, (B, IMG_C, IMG_HW, IMG_HW), jnp.float32)  # NCHW like PyTorch
    labels = (jax.random.uniform(k3, (B, G)) < 0.5).astype(jnp.float32)

    out = multimodal_forward(params, input_ids, attention_mask, image, labels=labels)
    jax.block_until_ready(out["logits"])
    jax.block_until_ready(out["loss"])
    assert out["logits"].shape == (B, G)
    print("KERNEL_OK")
</pallas_src>

<mosaic_0001>
module attributes {stable_mosaic.version = 11 : i64} {
  func.func @fused_kernel(%arg0: i32, %arg1: memref<8x128xf32, #tpu.memory_space<vmem>>, %arg2: memref<3x512xf32, #tpu.memory_space<vmem>>, %arg3: memref<264x128xf32, #tpu.memory_space<vmem>>, %arg4: memref<8x128xf32, #tpu.memory_space<vmem>>) attributes {dimension_semantics = [#tpu.dimension_semantics<arbitrary>], iteration_bounds = array<i64: 1>, scalar_prefetch = 0 : i64, scratch_operands = 0 : i64, tpu.core_type = #tpu.core_type<tc>, window_params = [{pipeline_mode = #tpu.pipeline_mode<synchronous>, transform_indices = @transform_0, window_bounds = array<i64: 8, 128>}, {pipeline_mode = #tpu.pipeline_mode<synchronous>, transform_indices = @transform_1, window_bounds = array<i64: 3, 512>}, {pipeline_mode = #tpu.pipeline_mode<synchronous>, transform_indices = @transform_2, window_bounds = array<i64: 264, 128>}, {pipeline_mode = #tpu.pipeline_mode<synchronous>, transform_indices = @transform_3, window_bounds = array<i64: 8, 128>}]} {
    %c0 = arith.constant 0 : index
    %c0_0 = arith.constant 0 : index
    %0 = vector.load %arg1[%c0, %c0_0] : memref<8x128xf32, #tpu.memory_space<vmem>>, vector<8x128xf32>
    %1 = vector.extract_strided_slice %0 {offsets = [0, 0], sizes = [2, 8], strides = [1, 1]} : vector<8x128xf32> to vector<2x8xf32>
    %2 = vector.extract_strided_slice %0 {offsets = [2, 0], sizes = [2, 8], strides = [1, 1]} : vector<8x128xf32> to vector<2x8xf32>
    %3 = vector.extract_strided_slice %0 {offsets = [4, 0], sizes = [2, 4], strides = [1, 1]} : vector<8x128xf32> to vector<2x4xf32>
    %4 = arith.fptosi %1 : vector<2x8xf32> to vector<2x8xi32>
    %5 = vector.shape_cast %4 : vector<2x8xi32> to vector<2x8x1xi32>
    %6 = tpu.iota {dimensions = array<i32: 2>} : vector<2x8x64xi32>
    %7 = vector.broadcast %5 : vector<2x8x1xi32> to vector<2x8x64xi32>
    %8 = arith.cmpi eq, %7, %6 : vector<2x8x64xi32>
    %9 = vector.shape_cast %2 : vector<2x8xf32> to vector<2x8x1xf32>
    %cst = arith.constant 0.000000e+00 : f32
    %10 = vector.shape_cast %9 : vector<2x8x1xf32> to vector<2x8x1xf32>
    %11 = vector.broadcast %10 : vector<2x8x1xf32> to vector<2x8x64xf32>
    %12 = vector.broadcast %cst : f32 to vector<2x8x64xf32>
    %13 = arith.select %8, %11, %12 : vector<2x8x64xi1>, vector<2x8x64xf32>
    %cst_1 = arith.constant dense<0.000000e+00> : vector<2x64xf32>
    %14 = vector.multi_reduction <add>, %13, %cst_1 [1] : vector<2x8x64xf32> to vector<2x64xf32>
    %cst_2 = arith.constant dense<0.000000e+00> : vector<2xf32>
    %15 = vector.multi_reduction <add>, %2, %cst_2 [1] : vector<2x8xf32> to vector<2xf32>
    %16 = vector.shape_cast %15 : vector<2xf32> to vector<2x1xf32>
    %cst_3 = arith.constant 1.000000e+00 : f32
    %17 = vector.broadcast %cst_3 : f32 to vector<2x1xf32>
    %18 = arith.maximumf %16, %17 : vector<2x1xf32>
    %19 = vector.broadcast %18 : vector<2x1xf32> to vector<2x64xf32>
    %20 = arith.divf %14, %19 : vector<2x64xf32>
    %c0_4 = arith.constant 0 : index
    %c0_5 = arith.constant 0 : index
    %21 = vector.load %arg3[%c0_4, %c0_5] : memref<264x128xf32, #tpu.memory_space<vmem>>, vector<64x32xf32>
    %cst_6 = arith.constant dense<0.000000e+00> : vector<2x32xf32>
    %22 = tpu.matmul %20, %21, %cst_6 {dimension_numbers = #tpu.dot_dimension_numbers<[1], [0], [0], [1], [0, 0, 1, 1], [], []>} : vector<2x64xf32>, vector<64x32xf32>, vector<2x32xf32> -> vector<2x32xf32>
    %c0_7 = arith.constant 0 : index
    %c0_8 = arith.constant 0 : index
    %23 = vector.load %arg2[%c0_7, %c0_8] : memref<3x512xf32, #tpu.memory_space<vmem>>, vector<3x512xf32>
    %c224 = arith.constant 224 : index
    %c0_9 = arith.constant 0 : index
    %24 = vector.load %arg3[%c224, %c0_9] : memref<264x128xf32, #tpu.memory_space<vmem>>, vector<32x3xf32>
    %c224_10 = arith.constant 224 : index
    %c4 = arith.constant 4 : index
    %25 = vector.load %arg3[%c224_10, %c4] : memref<264x128xf32, #tpu.memory_space<vmem>>, vector<32x1xf32>
    %cst_11 = arith.constant dense<0.000000e+00> : vector<32x512xf32>
    %26 = tpu.matmul %24, %23, %cst_11 {dimension_numbers = #tpu.dot_dimension_numbers<[1], [0], [0], [1], [0, 0, 1, 1], [], []>} : vector<32x3xf32>, vector<3x512xf32>, vector<32x512xf32> -> vector<32x512xf32>
    %27 = vector.broadcast %25 : vector<32x1xf32> to vector<32x512xf32>
    %28 = arith.addf %26, %27 : vector<32x512xf32>
    %cst_12 = arith.constant 0.000000e+00 : f32
    %29 = vector.broadcast %cst_12 : f32 to vector<32x512xf32>
    %30 = arith.maximumf %28, %29 : vector<32x512xf32>
    %31 = tpu.iota {dimensions = array<i32: 1>} : vector<2x512xi32>
    %32 = tpu.iota {dimensions = array<i32: 0>} : vector<2x512xi32>
    %c256_i32 = arith.constant 256 : i32
    %33 = vector.broadcast %c256_i32 : i32 to vector<2x512xi32>
    %34 = arith.muli %32, %33 : vector<2x512xi32>
    %35 = arith.cmpi sge, %31, %34 : vector<2x512xi32>
    %c256_i32_13 = arith.constant 256 : i32
    %36 = vector.broadcast %c256_i32_13 : i32 to vector<2x512xi32>
    %37 = arith.addi %34, %36 : vector<2x512xi32>
    %38 = arith.cmpi slt, %31, %37 : vector<2x512xi32>
    %39 = arith.andi %35, %38 : vector<2x512xi1>
    %cst_14 = arith.constant 3.906250e-03 : f32
    %cst_15 = arith.constant 0.000000e+00 : f32
    %40 = vector.broadcast %cst_14 : f32 to vector<2x512xf32>
    %41 = vector.broadcast %cst_15 : f32 to vector<2x512xf32>
    %42 = arith.select %39, %40, %41 : vector<2x512xi1>, vector<2x512xf32>
    %cst_16 = arith.constant dense<0.000000e+00> : vector<2x32xf32>
    %43 = tpu.matmul %42, %30, %cst_16 {dimension_numbers = #tpu.dot_dimension_numbers<[1], [1], [0], [0], [0, 0, 1, 0], [], []>} : vector<2x512xf32>, vector<32x512xf32>, vector<2x32xf32> -> vector<2x32xf32>
    %44 = tpu.concatenate %22, %43 in 1 : vector<2x32xf32>, vector<2x32xf32> -> vector<2x64xf32>
    %c64 = arith.constant 64 : index
    %c0_17 = arith.constant 0 : index
    %45 = vector.load %arg3[%c64, %c0_17] : memref<264x128xf32, #tpu.memory_space<vmem>>, vector<64x96xf32>
    %c256 = arith.constant 256 : index
    %c0_18 = arith.constant 0 : index
    %46 = vector.load %arg3[%c256, %c0_18] : memref<264x128xf32, #tpu.memory_space<vmem>>, vector<1x96xf32>
    %cst_19 = arith.constant dense<0.000000e+00> : vector<2x96xf32>
    %47 = tpu.matmul %44, %45, %cst_19 {dimension_numbers = #tpu.dot_dimension_numbers<[1], [0], [0], [1], [0, 0, 1, 1], [], []>} : vector<2x64xf32>, vector<64x96xf32>, vector<2x96xf32> -> vector<2x96xf32>
    %48 = vector.broadcast %46 : vector<1x96xf32> to vector<2x96xf32>
    %49 = arith.addf %47, %48 : vector<2x96xf32>
    %50 = tpu.iota {dimensions = array<i32: 1>} : vector<2x96xi32>
    %c32_i32 = arith.constant 32 : i32
    %51 = vector.broadcast %c32_i32 : i32 to vector<2x96xi32>
    %52 = arith.cmpi slt, %50, %51 : vector<2x96xi32>
    %53 = math.tanh %49 : vector<2x96xf32>
    %cst_20 = arith.constant 0.000000e+00 : f32
    %54 = vector.broadcast %cst_20 : f32 to vector<2x96xf32>
    %55 = arith.maximumf %49, %54 : vector<2x96xf32>
    %56 = arith.select %52, %53, %55 : vector<2x96xi1>, vector<2x96xf32>
    %c128 = arith.constant 128 : index
    %c0_21 = arith.constant 0 : index
    %57 = vector.load %arg3[%c128, %c0_21] : memref<264x128xf32, #tpu.memory_space<vmem>>, vector<96x4xf32>
    %c257 = arith.constant 257 : index
    %c0_22 = arith.constant 0 : index
    %58 = vector.load %arg3[%c257, %c0_22] : memref<264x128xf32, #tpu.memory_space<vmem>>, vector<1x4xf32>
    %cst_23 = arith.constant dense<0.000000e+00> : vector<2x4xf32>
    %59 = tpu.matmul %56, %57, %cst_23 {dimension_numbers = #tpu.dot_dimension_numbers<[1], [0], [0], [1], [0, 0, 1, 1], [], []>} : vector<2x96xf32>, vector<96x4xf32>, vector<2x4xf32> -> vector<2x4xf32>
    %60 = vector.broadcast %58 : vector<1x4xf32> to vector<2x4xf32>
    %61 = arith.addf %59, %60 : vector<2x4xf32>
    %c258 = arith.constant 258 : index
    %c0_24 = arith.constant 0 : index
    %62 = vector.load %arg3[%c258, %c0_24] : memref<264x128xf32, #tpu.memory_space<vmem>>, vector<1x4xf32>
    %63 = vector.broadcast %62 : vector<1x4xf32> to vector<2x4xf32>
    %64 = arith.mulf %63, %3 : vector<2x4xf32>
    %cst_25 = arith.constant 0.000000e+00 : f32
    %65 = vector.broadcast %cst_25 : f32 to vector<2x4xf32>
    %66 = arith.subf %65, %61 : vector<2x4xf32>
    %cst_26 = arith.constant 0.000000e+00 : f32
    %67 = vector.broadcast %cst_26 : f32 to vector<2x4xf32>
    %68 = arith.maximumf %66, %67 : vector<2x4xf32>
    %69 = math.absf %66 : vector<2x4xf32>
    %cst_27 = arith.constant 0.000000e+00 : f32
    %70 = vector.broadcast %cst_27 : f32 to vector<2x4xf32>
    %71 = arith.subf %70, %69 : vector<2x4xf32>
    %72 = math.exp %71 : vector<2x4xf32>
    %cst_28 = arith.constant 1.000000e+00 : f32
    %73 = vector.broadcast %cst_28 : f32 to vector<2x4xf32>
    %74 = arith.addf %73, %72 : vector<2x4xf32>
    %75 = math.log %74 : vector<2x4xf32>
    %76 = arith.addf %68, %75 : vector<2x4xf32>
    %77 = arith.mulf %64, %76 : vector<2x4xf32>
    %cst_29 = arith.constant 1.000000e+00 : f32
    %78 = vector.broadcast %cst_29 : f32 to vector<2x4xf32>
    %79 = arith.subf %78, %3 : vector<2x4xf32>
    %cst_30 = arith.constant 0.000000e+00 : f32
    %80 = vector.broadcast %cst_30 : f32 to vector<2x4xf32>
    %81 = arith.maximumf %61, %80 : vector<2x4xf32>
    %82 = math.absf %61 : vector<2x4xf32>
    %cst_31 = arith.constant 0.000000e+00 : f32
    %83 = vector.broadcast %cst_31 : f32 to vector<2x4xf32>
    %84 = arith.subf %83, %82 : vector<2x4xf32>
    %85 = math.exp %84 : vector<2x4xf32>
    %cst_32 = arith.constant 1.000000e+00 : f32
    %86 = vector.broadcast %cst_32 : f32 to vector<2x4xf32>
    %87 = arith.addf %86, %85 : vector<2x4xf32>
    %88 = math.log %87 : vector<2x4xf32>
    %89 = arith.addf %81, %88 : vector<2x4xf32>
    %90 = arith.mulf %79, %89 : vector<2x4xf32>
    %91 = arith.addf %77, %90 : vector<2x4xf32>
    %92 = vector.shape_cast %91 : vector<2x4xf32> to vector<1x2x4xf32>
    %cst_33 = arith.constant dense<0.000000e+00> : vector<1xf32>
    %93 = vector.multi_reduction <add>, %92, %cst_33 [1, 2] : vector<1x2x4xf32> to vector<1xf32>
    %94 = vector.shape_cast %93 : vector<1xf32> to vector<1x1x1xf32>
    %95 = vector.extract %94[0, 0, 0] : f32 from vector<1x1x1xf32>
    %96 = vector.broadcast %95 : f32 to vector<1x1xf32>
    %cst_34 = arith.constant 8.000000e+00 : f32
    %97 = vector.broadcast %cst_34 : f32 to vector<1x1xf32>
    %98 = arith.divf %96, %97 : vector<1x1xf32>
    %cst_35 = arith.constant 0.000000e+00 : f32
    %99 = vector.broadcast %cst_35 : f32 to vector<8x128xf32>
    %c0_36 = arith.constant 0 : index
    %c0_37 = arith.constant 0 : index
    %100 = vector.load %arg4[%c0_36, %c0_37] : memref<8x128xf32, #tpu.memory_space<vmem>>, vector<8x128xf32>
    tpu.vector_store %arg4[%c0_36, %c0_37], %99 {strides = array<i32>} : memref<8x128xf32, #tpu.memory_space<vmem>>, vector<8x128xf32>,
    %c0_38 = arith.constant 0 : index
    %c0_39 = arith.constant 0 : index
    %101 = vector.load %arg4[%c0_38, %c0_39] : memref<8x128xf32, #tpu.memory_space<vmem>>, vector<2x4xf32>
    tpu.vector_store %arg4[%c0_38, %c0_39], %61 {strides = array<i32>} : memref<8x128xf32, #tpu.memory_space<vmem>>, vector<2x4xf32>,
    %c4_40 = arith.constant 4 : index
    %c0_41 = arith.constant 0 : index
    %102 = vector.load %arg4[%c4_40, %c0_41] : memref<8x128xf32, #tpu.memory_space<vmem>>, vector<1x1xf32>
    tpu.vector_store %arg4[%c4_40, %c0_41], %98 {strides = array<i32>} : memref<8x128xf32, #tpu.memory_space<vmem>>, vector<1x1xf32>,
    return
  }
  func.func @transform_0(%arg0: i32) -> (i32, i32) {
    %c0_i32 = arith.constant 0 : i32
    %c0_i32_0 = arith.constant 0 : i32
    %c0_i32_1 = arith.constant 0 : i32
    return %c0_i32, %c0_i32_0 : i32, i32
  }
  func.func @transform_1(%arg0: i32) -> (i32, i32) {
    %c0_i32 = arith.constant 0 : i32
    %c0_i32_0 = arith.constant 0 : i32
    %c0_i32_1 = arith.constant 0 : i32
    return %c0_i32, %c0_i32_0 : i32, i32
  }
  func.func @transform_2(%arg0: i32) -> (i32, i32) {
    %c0_i32 = arith.constant 0 : i32
    %c0_i32_0 = arith.constant 0 : i32
    %c0_i32_1 = arith.constant 0 : i32
    return %c0_i32, %c0_i32_0 : i32, i32
  }
  func.func @transform_3(%arg0: i32) -> (i32, i32) {
    %c0_i32 = arith.constant 0 : i32
    %c0_i32_0 = arith.constant 0 : i32
    %c0_i32_1 = arith.constant 0 : i32
    return %c0_i32, %c0_i32_0 : i32, i32
  }
}

</mosaic_0001>

<llo_original>
// kernel: tpu_custom_call.1
$region0: #{tpu_custom_call.1}
  #allocation0 [shape = 'u32[]', space=smem, size = 0x4, offset = 0x4, fixed_abs, tag = 'smem constant byte address 0x4 - core index']
  #allocation1 [shape = 'u32[72,128]{1,0:T(1,128)}', space=vmem, size = 0x9000, scoped, tag = 'internal scratch']
  %s0 = inlined_call_operand.hbm [shape: f32[8,128], index: 0, kind: input, shape index: {}]
  %s1 = inlined_call_operand.hbm [shape: f32[3,512], index: 1, kind: input, shape index: {}]
  %s2 = inlined_call_operand.hbm [shape: f32[264,128], index: 2, kind: input, shape index: {}]
  %s3 = inlined_call_operand.hbm [shape: f32[8,128], index: 3, kind: output, shape index: {}]
  %s4 = sld [smem:[#allocation0]]
  $region34: #{tpu_custom_call.1} parent=0
    _
  %s6 = ssub.s32 1, %s4
  %s7 = scalar_select 0, %s6, %s4
  $region1: #{tpu_custom_call.1} parent=0
    #allocation2 [shape = 'u8[4096]{0}', space=vmem, size = 0x1000, scoped, tag = 'input window, operand 0, single buffered']
    #allocation3 [shape = 's32[1]{0}', space=sflag, size = 0x4, scoped, tag = 'scoped memory for tpu_custom_call.1']
    #allocation4 [shape = 's32[1]{0}', space=sflag, size = 0x4, scoped, tag = 'scoped memory for tpu_custom_call.1']
    #allocation5 [shape = 'u8[8192]{0}', space=vmem, size = 0x2000, scoped, tag = 'input window, operand 1, single buffered']
    #allocation6 [shape = 's32[1]{0}', space=sflag, size = 0x4, scoped, tag = 'scoped memory for tpu_custom_call.1']
    #allocation7 [shape = 'u8[135168]{0}', space=vmem, size = 0x21000, scoped, tag = 'input window, operand 2, single buffered']
    #allocation8 [shape = 'u8[4096]{0}', space=vmem, size = 0x1000, scoped, tag = 'output window, operand 0, single buffered']
    %8 = vsyncpa [#allocation3], 0
    %9 = vsyncpa [#allocation6], 0
    %10 = vsyncpa [#allocation4], 0
    // Predicated region
    $region2: #{tpu_custom_call.1} parent=1 // pred_check
      _
    $region3: #{tpu_custom_call.1} parent=1 // pred_check_branch
      %12 = sbr.rel (0) target = $region5
    $region4: #{tpu_custom_call.1} parent=1 // pred_region
      %14 = vsyncadd [#allocation3], 0
      %s16 = sshll.u32 %s0, 4
      %s17 = int_to_ptr.hbm [resolvable:$true] %s16
      %s18 = sshll.u32 [#allocation2], 4
      %s19 = int_to_ptr.vmem [resolvable:$true] %s18
      %21 = dma.hbm_to_vmem [thread:$0]  %s17, 128, %s19, [#allocation3]
    $region5: #{tpu_custom_call.1} parent=1 // pred_fallthru
      _
    // Predicated region
    $region6: #{tpu_custom_call.1} parent=1 // pred_check
      _
    $region7: #{tpu_custom_call.1} parent=1 // pred_check_branch
      %23 = sbr.rel (0) target = $region9
    $region8: #{tpu_custom_call.1} parent=1 // pred_region
      %25 = vsyncadd [#allocation6], 0
      %s27 = sshll.u32 %s1, 4
      %s28 = int_to_ptr.hbm [resolvable:$true] %s27
      %s29 = sshll.u32 [#allocation5], 4
      %s30 = int_to_ptr.vmem [resolvable:$true] %s29
      %32 = dma.hbm_to_vmem [thread:$0]  %s28, 256, %s30, [#allocation6]
    $region9: #{tpu_custom_call.1} parent=1 // pred_fallthru
      _
    // Predicated region
    $region10: #{tpu_custom_call.1} parent=1 // pred_check
      _
    $region11: #{tpu_custom_call.1} parent=1 // pred_check_branch
      %34 = sbr.rel (0) target = $region13
    $region12: #{tpu_custom_call.1} parent=1 // pred_region
      %36 = vsyncadd [#allocation6], 0
      %s37 = sshll.u32 %s2, 4
      %s38 = int_to_ptr.hbm [resolvable:$true] %s37
      %s39 = sshll.u32 [#allocation7], 4
      %s40 = int_to_ptr.vmem [resolvable:$true] %s39
      %45 = dma.hbm_to_vmem [thread:$0]  %s38, 4224, %s40, [#allocation6], 128, 128, 8
    $region13: #{tpu_custom_call.1} parent=1 // pred_fallthru
      _
    // Predicated region
    $region14: #{tpu_custom_call.1} parent=1 // pred_check
      _
    $region15: #{tpu_custom_call.1} parent=1 // pred_check_branch
      %47 = sbr.rel (0) target = $region17
    $region16: #{tpu_custom_call.1} parent=1 // pred_region
      %49 = dma.done [#allocation3], 128
    $region17: #{tpu_custom_call.1} parent=1 // pred_fallthru
      _
    // Predicated region
    $region18: #{tpu_custom_call.1} parent=1 // pred_check
      _
    $region19: #{tpu_custom_call.1} parent=1 // pred_check_branch
      %51 = sbr.rel (0) target = $region21
    $region20: #{tpu_custom_call.1} parent=1 // pred_region
      %53 = dma.done [#allocation6], 256
    $region21: #{tpu_custom_call.1} parent=1 // pred_fallthru
      _
    // Predicated region
    $region22: #{tpu_custom_call.1} parent=1 // pred_check
      _
    $region23: #{tpu_custom_call.1} parent=1 // pred_check_branch
      %55 = sbr.rel (0) target = $region25
    $region24: #{tpu_custom_call.1} parent=1 // pred_region
      %57 = dma.done [#allocation6], 4224
    $region25: #{tpu_custom_call.1} parent=1 // pred_fallthru
      _
    %v58 = vld [vmem:[#allocation2] sm:$0xff]
    %v59 = vcvt.f32.s32.to.zero.pseudo %v58
    %v60 = vperm.slane %v59, 0
    %v61 = vlaneseq
    %v62 = vshrl.u32 %v61, 7
    %64 = vset.pattern.permute.xlu0 %v62
    %65 = vperm.xlu0 %64, %v60
    %v66 = vpop.permute.xlu0 %65
    %v67 = vperm.slane %v59, 1
    %v68 = vlaneseq
    %v69 = vshrl.u32 %v68, 7
    %71 = vset.pattern.permute.xlu0 %v69
    %72 = vperm.xlu0 %71, %v67
    %v73 = vpop.permute.xlu0 %72
    %v74 = vlaneseq
    %v75 = vand.u32 %v74, 127
    %vm76 = vcmp.eq.s32.totalorder %v66, %v75
    %vm77 = vcmp.eq.s32.totalorder %v73, %v75
    %v78 = vperm.slane %v58, 2
    %v79 = vlaneseq
    %v80 = vshrl.u32 %v79, 7
    %82 = vset.pattern.permute.xlu0 %v80
    %83 = vperm.xlu0 %82, %v78
    %v84 = vpop.permute.xlu0 %83
    %v85 = vperm.slane %v58, 3
    %v86 = vlaneseq
    %v87 = vshrl.u32 %v86, 7
    %89 = vset.pattern.permute.xlu0 %v87
    %90 = vperm.xlu0 %89, %v85
    %v91 = vpop.permute.xlu0 %90
    %v92 = vsel %vm76, %v84, 0.0
    %v93 = vsel %vm77, %v91, 0.0
    %vm94 = vcmask 523264
    %v95 = vsel %vm94, %v92, 0.0
    %v96 = vrot.slane %v95, 4
    %v97 = vadd.f32 %v95, %v96
    %v98 = vrot.slane %v97, 2
    %v99 = vadd.f32 %v97, %v98
    %v100 = vrot.slane %v99, 1
    %v101 = vadd.f32 %v99, %v100
    %v102 = vsel %vm94, %v93, 0.0
    %v103 = vrot.slane %v102, 4
    %v104 = vadd.f32 %v102, %v103
    %v105 = vrot.slane %v104, 2
    %v106 = vadd.f32 %v104, %v105
    %v107 = vrot.slane %v106, 1
    %v108 = vadd.f32 %v106, %v107
    %vm109 = vcmask 60418
    %v110 = vsel %vm109, %v58, 0.0
    %111 = vadd.xlane.f32.xlu0 %v110
    %v112 = vpop.xlane.xlu0 %111
    %v113 = vmax.f32 %v112, 1.0
    %v115 = vrot.slane %v113, 2
    %v116 = vrot.slane %v113, 3
    %v119 = vrcp.pop %v115
    %v120 = vmul.f32 %v115, %v119
    %v121 = vsub.f32 1.0, %v120
    %v122 = vmul.f32 %v119, %v121
    %v123 = vadd.f32 %v119, %v122
    %vm124 = vweird.f32 %v115
    %vm125 = vweird.f32 %v119
    %vm126 = vmor %vm124, %vm125
    %v127 = vsel %vm126, %v119, %v123
    %v128 = vand.u32 2147483647, %v115
    %vm129 = vcmp.eq.f32.partialorder %v128, 8.507059e+37
    %v130 = vand.u32 %v115, 2147483648
    %v131 = vor.u32 1.1754944e-38, %v130
    %v132 = vsel %vm129, %v131, %v127
    %v133 = vmul.f32 %v101, %v132
    %v134 = vrcp.pop %v116
    %v135 = vmul.f32 %v116, %v134
    %v136 = vsub.f32 1.0, %v135
    %v137 = vmul.f32 %v134, %v136
    %v138 = vadd.f32 %v134, %v137
    %vm139 = vweird.f32 %v116
    %vm140 = vweird.f32 %v134
    %vm141 = vmor %vm139, %vm140
    %v142 = vsel %vm141, %v134, %v138
    %v143 = vand.u32 2147483647, %v116
    %vm144 = vcmp.eq.f32.partialorder %v143, 8.507059e+37
    %v145 = vand.u32 %v116, 2147483648
    %v146 = vor.u32 1.1754944e-38, %v145
    %v147 = vsel %vm144, %v146, %v142
    %v148 = vmul.f32 %v108, %v147
    %v149 = vld [vmem:[#allocation7] sm:$0xff]
    %v150 = vld [vmem:[#allocation7 + $0x8] sm:$0xff]
    %v151 = vld [vmem:[#allocation7 + $0x10] sm:$0xff]
    %v152 = vld [vmem:[#allocation7 + $0x18] sm:$0xff]
    %v153 = vld [vmem:[#allocation7 + $0x20] sm:$0xff]
    %v154 = vld [vmem:[#allocation7 + $0x28] sm:$0xff]
    %v155 = vld [vmem:[#allocation7 + $0x30] sm:$0xff]
    %v156 = vld [vmem:[#allocation7 + $0x38] sm:$0xff]
    %v159 = vrot.slane %v148, 7
    %vm160 = vcmask 1041409
    %v161 = vsel %vm160, %v159, %v133
    %v162 = vsel %vm94, %v161, 0
    %164 = vmatpush.msra.mxu0 0.0
    %165 = vmatpush.msra.mxu0 0.0
    %166 = vmatpush.msra.mxu0 0.0
    %167 = vmatpush.msra.mxu0 0.0
    %168 = vmatpush.msra.mxu0 0.0
    %169 = vmatpush.msra.mxu0 0.0
    %170 = vmatpush.msra.mxu0 0.0
    %171 = vmatpush.msra.mxu0 0.0
    %172 = vmatpush.msra.mxu0 %v156
    %173 = vmatpush.msra.mxu0 %v155
    %174 = vmatpush.msra.mxu0 %v154
    %175 = vmatpush.msra.mxu0 %v153
    %176 = vmatpush.msra.mxu0 %v152
    %177 = vmatpush.msra.mxu0 %v151
    %178 = vmatpush.msra.mxu0 %v150
    %179 = vmatpush.msra.mxu0 %v149
    %180 = vmatmul.f32.gmra.mxu0 %v162
    %v181 = vpop.f32.mrf.mxu0
    %v182 = vadd.f32 0.0, %v181
    %183 = vdwg.mxu0
    %v184 = vld [vmem:[#allocation5] sm:$0x77]
    %v185 = vld [vmem:[#allocation5 + $0x8] sm:$0x77]
    %v186 = vld [vmem:[#allocation7 + $0xe0] sm:$0xff]
    %v187 = vld [vmem:[#allocation7 + $0xe8] sm:$0xff]
    %v188 = vld [vmem:[#allocation7 + $0xf0] sm:$0xff]
    %v189 = vld [vmem:[#allocation7 + $0xf8] sm:$0xff]
    %191 = vset.pattern.permute.xlu0 4
    %192 = vperm.xlu0 %191, %v186
    %v193 = vpop.permute.xlu0 %192
    %196 = vset.pattern.permute.xlu0 4
    %197 = vperm.xlu0 %196, %v187
    %v198 = vpop.permute.xlu0 %197
    %201 = vset.pattern.permute.xlu0 4
    %202 = vperm.xlu0 %201, %v188
    %v203 = vpop.permute.xlu0 %202
    %206 = vset.pattern.permute.xlu0 4
    %207 = vperm.xlu0 %206, %v189
    %v208 = vpop.permute.xlu0 %207
    %212 = vst [vmem:[#allocation1] ss:$2 sm:$0xff] %v184
    %s213 = scalar_lea.vmem [#allocation1], 16
    %214 = vst [vmem:[%s213] ss:$2 sm:$0xff] %v185
    %v215 = vld.sshfl [vmem:[#allocation1] sm:$0xff pattern:$0x75316420]
    %v216 = vld.sshfl [vmem:[#allocation1 + $0x8] sm:$0xff pattern:$0x75316420]
    %v217 = vld.sshfl [vmem:[#allocation1 + $0x10] sm:$0xff pattern:$0x75316420]
    %v218 = vld.sshfl [vmem:[#allocation1 + $0x18] sm:$0xff pattern:$0x75316420]
    %vm219 = vcmask 23552
    %v220 = vsel %vm219, %v186, 0
    %v222 = vsel %vm219, %v187, 0
    %v224 = vsel %vm219, %v188, 0
    %v226 = vsel %vm219, %v189, 0
    %vm228 = vcmask 1042432
    %v229 = vsel %vm228, %v215, 0
    %v231 = vsel %vm228, %v216, 0
    %v233 = vsel %vm228, %v217, 0
    %v235 = vsel %vm228, %v218, 0
    %237 = vmatpush.msra.mxu0 0.0
    %238 = vmatpush.msra.mxu0 0.0
    %239 = vmatpush.msra.mxu0 0.0
    %240 = vmatpush.msra.mxu0 0.0
    %241 = vmatpush.msra.mxu0 0.0
    %242 = vmatpush.msra.mxu0 0.0
    %243 = vmatpush.msra.mxu0 0.0
    %244 = vmatpush.msra.mxu0 0.0
    %245 = vmatpush.msra.mxu0 0.0
    %246 = vmatpush.msra.mxu0 0.0
    %247 = vmatpush.msra.mxu0 0.0
    %248 = vmatpush.msra.mxu0 0.0
    %249 = vmatpush.msra.mxu0 0.0
    %250 = vmatpush.msra.mxu0 0.0
    %251 = vmatpush.msra.mxu0 0.0
    %252 = vmatpush.msra.mxu0 %v229
    %253 = vmatmul.f32.gmra.mxu0 %v220
    %v254 = vpop.f32.mrf.mxu0
    %v255 = vadd.f32 %v193, %v254
    %256 = vmatmul.f32.gmra.mxu0 %v222
    %v257 = vpop.f32.mrf.mxu0
    %v258 = vadd.f32 %v198, %v257
    %259 = vmatmul.f32.gmra.mxu0 %v224
    %v260 = vpop.f32.mrf.mxu0
    %v261 = vadd.f32 %v203, %v260
    %262 = vmatmul.f32.gmra.mxu0 %v226
    %v263 = vpop.f32.mrf.mxu0
    %v264 = vadd.f32 %v208, %v263
    %265 = vdwg.mxu0
    %266 = vmatpush.msra.mxu0 0.0
    %267 = vmatpush.msra.mxu0 0.0
    %268 = vmatpush.msra.mxu0 0.0
    %269 = vmatpush.msra.mxu0 0.0
    %270 = vmatpush.msra.mxu0 0.0
    %271 = vmatpush.msra.mxu0 0.0
    %272 = vmatpush.msra.mxu0 0.0
    %273 = vmatpush.msra.mxu0 0.0
    %274 = vmatpush.msra.mxu0 0.0
    %275 = vmatpush.msra.mxu0 0.0
    %276 = vmatpush.msra.mxu0 0.0
    %277 = vmatpush.msra.mxu0 0.0
    %278 = vmatpush.msra.mxu0 0.0
    %279 = vmatpush.msra.mxu0 0.0
    %280 = vmatpush.msra.mxu0 0.0
    %281 = vmatpush.msra.mxu0 %v231
    %282 = vmatmul.f32.gmra.mxu0 %v220
    %v283 = vpop.f32.mrf.mxu0
    %v284 = vadd.f32 %v193, %v283
    %285 = vmatmul.f32.gmra.mxu0 %v222
    %v286 = vpop.f32.mrf.mxu0
    %v287 = vadd.f32 %v198, %v286
    %288 = vmatmul.f32.gmra.mxu0 %v224
    %v289 = vpop.f32.mrf.mxu0
    %v290 = vadd.f32 %v203, %v289
    %291 = vmatmul.f32.gmra.mxu0 %v226
    %v292 = vpop.f32.mrf.mxu0
    %v293 = vadd.f32 %v208, %v292
    %294 = vdwg.mxu0
    %295 = vmatpush.msra.mxu0 0.0
    %296 = vmatpush.msra.mxu0 0.0
    %297 = vmatpush.msra.mxu0 0.0
    %298 = vmatpush.msra.mxu0 0.0
    %299 = vmatpush.msra.mxu0 0.0
    %300 = vmatpush.msra.mxu0 0.0
    %301 = vmatpush.msra.mxu0 0.0
    %302 = vmatpush.msra.mxu0 0.0
    %303 = vmatpush.msra.mxu0 0.0
    %304 = vmatpush.msra.mxu0 0.0
    %305 = vmatpush.msra.mxu0 0.0
    %306 = vmatpush.msra.mxu0 0.0
    %307 = vmatpush.msra.mxu0 0.0
    %308 = vmatpush.msra.mxu0 0.0
    %309 = vmatpush.msra.mxu0 0.0
    %310 = vmatpush.msra.mxu0 %v233
    %311 = vmatmul.f32.gmra.mxu0 %v220
    %v312 = vpop.f32.mrf.mxu0
    %v313 = vadd.f32 %v193, %v312
    %314 = vmatmul.f32.gmra.mxu0 %v222
    %v315 = vpop.f32.mrf.mxu0
    %v316 = vadd.f32 %v198, %v315
    %317 = vmatmul.f32.gmra.mxu0 %v224
    %v318 = vpop.f32.mrf.mxu0
    %v319 = vadd.f32 %v203, %v318
    %320 = vmatmul.f32.gmra.mxu0 %v226
    %v321 = vpop.f32.mrf.mxu0
    %v322 = vadd.f32 %v208, %v321
    %323 = vdwg.mxu0
    %324 = vmatpush.msra.mxu0 0.0
    %325 = vmatpush.msra.mxu0 0.0
    %326 = vmatpush.msra.mxu0 0.0
    %327 = vmatpush.msra.mxu0 0.0
    %328 = vmatpush.msra.mxu0 0.0
    %329 = vmatpush.msra.mxu0 0.0
    %330 = vmatpush.msra.mxu0 0.0
    %331 = vmatpush.msra.mxu0 0.0
    %332 = vmatpush.msra.mxu0 0.0
    %333 = vmatpush.msra.mxu0 0.0
    %334 = vmatpush.msra.mxu0 0.0
    %335 = vmatpush.msra.mxu0 0.0
    %336 = vmatpush.msra.mxu0 0.0
    %337 = vmatpush.msra.mxu0 0.0
    %338 = vmatpush.msra.mxu0 0.0
    %339 = vmatpush.msra.mxu0 %v235
    %340 = vmatmul.f32.gmra.mxu0 %v220
    %v341 = vpop.f32.mrf.mxu0
    %v342 = vadd.f32 %v193, %v341
    %343 = vmatmul.f32.gmra.mxu0 %v222
    %v344 = vpop.f32.mrf.mxu0
    %v345 = vadd.f32 %v198, %v344
    %346 = vmatmul.f32.gmra.mxu0 %v224
    %v347 = vpop.f32.mrf.mxu0
    %v348 = vadd.f32 %v203, %v347
    %349 = vmatmul.f32.gmra.mxu0 %v226
    %v350 = vpop.f32.mrf.mxu0
    %v351 = vadd.f32 %v208, %v350
    %352 = vdwg.mxu0
    %v353 = vmax.f32 %v255, 0.0
    %v354 = vmax.f32 %v284, 0.0
    %v355 = vmax.f32 %v313, 0.0
    %v356 = vmax.f32 %v342, 0.0
    %v357 = vmax.f32 %v258, 0.0
    %v358 = vmax.f32 %v287, 0.0
    %v359 = vmax.f32 %v316, 0.0
    %v360 = vmax.f32 %v345, 0.0
    %v361 = vmax.f32 %v261, 0.0
    %v362 = vmax.f32 %v290, 0.0
    %v363 = vmax.f32 %v319, 0.0
    %v364 = vmax.f32 %v348, 0.0
    %v365 = vmax.f32 %v264, 0.0
    %v366 = vmax.f32 %v293, 0.0
    %v367 = vmax.f32 %v322, 0.0
    %v368 = vmax.f32 %v351, 0.0
    %v369 = vadd.s32 %v75, 128
    %v370 = vadd.s32 %v75, 256
    %v371 = vadd.s32 %v75, 384
    %v372 = vlaneseq
    %v373 = vshrl.u32 %v372, 7
    %v374 = vmul.u32 %v373, 256
    %vm375 = vcmp.ge.s32.totalorder %v75, %v374
    %vm376 = vcmp.ge.s32.totalorder %v369, %v374
    %vm377 = vcmp.ge.s32.totalorder %v370, %v374
    %vm378 = vcmp.ge.s32.totalorder %v371, %v374
    %v379 = vadd.s32 %v374, 256
    %vm380 = vcmp.lt.s32.totalorder %v75, %v379
    %vm381 = vcmp.lt.s32.totalorder %v369, %v379
    %vm382 = vcmp.lt.s32.totalorder %v370, %v379
    %vm383 = vcmp.lt.s32.totalorder %v371, %v379
    %vm384 = vmand %vm375, %vm380
    %vm385 = vmand %vm376, %vm381
    %vm386 = vmand %vm377, %vm382
    %vm387 = vmand %vm378, %vm383
    %v388 = vsel %vm384, 0.00390625, 0.0
    %v389 = vsel %vm385, 0.00390625, 0.0
    %v390 = vsel %vm386, 0.00390625, 0.0
    %v391 = vsel %vm387, 0.00390625, 0.0
    %392 = vmatpush.xpose.msra.mxu0 0.0
    %393 = vmatpush.xpose.msra.mxu0 0.0
    %394 = vmatpush.xpose.msra.mxu0 0.0
    %395 = vmatpush.xpose.msra.mxu0 0.0
    %396 = vmatpush.xpose.msra.mxu0 0.0
    %397 = vmatpush.xpose.msra.mxu0 0.0
    %398 = vmatpush.xpose.msra.mxu0 0.0
    %399 = vmatpush.xpose.msra.mxu0 0.0
    %400 = vmatpush.xpose.msra.mxu0 0.0
    %401 = vmatpush.xpose.msra.mxu0 0.0
    %402 = vmatpush.xpose.msra.mxu0 0.0
    %403 = vmatpush.xpose.msra.mxu0 0.0
    %404 = vmatpush.xpose.msra.mxu0 %v365
    %405 = vmatpush.xpose.msra.mxu0 %v361
    %406 = vmatpush.xpose.msra.mxu0 %v357
    %407 = vmatpush.xpose.msra.mxu0 %v353
    %408 = vmatmul.f32.gmra.mxu0 %v388
    %v409 = vpop.f32.mrf.mxu0
    %v410 = vadd.f32 0.0, %v409
    %411 = vdwg.mxu0
    %412 = vmatpush.xpose.msra.mxu0 0.0
    %413 = vmatpush.xpose.msra.mxu0 0.0
    %414 = vmatpush.xpose.msra.mxu0 0.0
    %415 = vmatpush.xpose.msra.mxu0 0.0
    %416 = vmatpush.xpose.msra.mxu0 0.0
    %417 = vmatpush.xpose.msra.mxu0 0.0
    %418 = vmatpush.xpose.msra.mxu0 0.0
    %419 = vmatpush.xpose.msra.mxu0 0.0
    %420 = vmatpush.xpose.msra.mxu0 0.0
    %421 = vmatpush.xpose.msra.mxu0 0.0
    %422 = vmatpush.xpose.msra.mxu0 0.0
    %423 = vmatpush.xpose.msra.mxu0 0.0
    %424 = vmatpush.xpose.msra.mxu0 %v366
    %425 = vmatpush.xpose.msra.mxu0 %v362
    %426 = vmatpush.xpose.msra.mxu0 %v358
    %427 = vmatpush.xpose.msra.mxu0 %v354
    %428 = vmatmul.f32.gmra.mxu0 %v389
    %v429 = vpop.f32.mrf.mxu0
    %v430 = vadd.f32 %v410, %v429
    %431 = vdwg.mxu0
    %432 = vmatpush.xpose.msra.mxu0 0.0
    %433 = vmatpush.xpose.msra.mxu0 0.0
    %434 = vmatpush.xpose.msra.mxu0 0.0
    %435 = vmatpush.xpose.msra.mxu0 0.0
    %436 = vmatpush.xpose.msra.mxu0 0.0
    %437 = vmatpush.xpose.msra.mxu0 0.0
    %438 = vmatpush.xpose.msra.mxu0 0.0
    %439 = vmatpush.xpose.msra.mxu0 0.0
    %440 = vmatpush.xpose.msra.mxu0 0.0
    %441 = vmatpush.xpose.msra.mxu0 0.0
    %442 = vmatpush.xpose.msra.mxu0 0.0
    %443 = vmatpush.xpose.msra.mxu0 0.0
    %444 = vmatpush.xpose.msra.mxu0 %v367
    %445 = vmatpush.xpose.msra.mxu0 %v363
    %446 = vmatpush.xpose.msra.mxu0 %v359
    %447 = vmatpush.xpose.msra.mxu0 %v355
    %448 = vmatmul.f32.gmra.mxu0 %v390
    %v449 = vpop.f32.mrf.mxu0
    %v450 = vadd.f32 %v430, %v449
    %451 = vdwg.mxu0
    %452 = vmatpush.xpose.msra.mxu0 0.0
    %453 = vmatpush.xpose.msra.mxu0 0.0
    %454 = vmatpush.xpose.msra.mxu0 0.0
    %455 = vmatpush.xpose.msra.mxu0 0.0
    %456 = vmatpush.xpose.msra.mxu0 0.0
    %457 = vmatpush.xpose.msra.mxu0 0.0
    %458 = vmatpush.xpose.msra.mxu0 0.0
    %459 = vmatpush.xpose.msra.mxu0 0.0
    %460 = vmatpush.xpose.msra.mxu0 0.0
    %461 = vmatpush.xpose.msra.mxu0 0.0
    %462 = vmatpush.xpose.msra.mxu0 0.0
    %463 = vmatpush.xpose.msra.mxu0 0.0
    %464 = vmatpush.xpose.msra.mxu0 %v368
    %465 = vmatpush.xpose.msra.mxu0 %v364
    %466 = vmatpush.xpose.msra.mxu0 %v360
    %467 = vmatpush.xpose.msra.mxu0 %v356
    %468 = vmatmul.f32.gmra.mxu0 %v391
    %v469 = vpop.f32.mrf.mxu0
    %v470 = vadd.f32 %v450, %v469
    %471 = vdwg.mxu0
    %473 = vrot.lane.b32.xlu0 %v470, 32
    %v474 = vpop.permute.xlu0 %473
    %vm476 = vcmask 261120
    %v477 = vsel %vm476, %v182, %v474
    %v478 = vld [vmem:[#allocation7 + $0x40] sm:$0xff]
    %v479 = vld [vmem:[#allocation7 + $0x48] sm:$0xff]
    %v480 = vld [vmem:[#allocation7 + $0x50] sm:$0xff]
    %v481 = vld [vmem:[#allocation7 + $0x58] sm:$0xff]
    %v482 = vld [vmem:[#allocation7 + $0x60] sm:$0xff]
    %v483 = vld [vmem:[#allocation7 + $0x68] sm:$0xff]
    %v484 = vld [vmem:[#allocation7 + $0x70] sm:$0xff]
    %v485 = vld [vmem:[#allocation7 + $0x78] sm:$0xff]
    %v486 = vld [vmem:[#allocation7 + $0x100] sm:$0x1]
    %v487 = vperm.slane %v486, 0
    %v489 = vsel %vm94, %v477, 0
    %491 = vmatpush.msra.mxu0 0.0
    %492 = vmatpush.msra.mxu0 0.0
    %493 = vmatpush.msra.mxu0 0.0
    %494 = vmatpush.msra.mxu0 0.0
    %495 = vmatpush.msra.mxu0 0.0
    %496 = vmatpush.msra.mxu0 0.0
    %497 = vmatpush.msra.mxu0 0.0
    %498 = vmatpush.msra.mxu0 0.0
    %499 = vmatpush.msra.mxu0 %v485
    %500 = vmatpush.msra.mxu0 %v484
    %501 = vmatpush.msra.mxu0 %v483
    %502 = vmatpush.msra.mxu0 %v482
    %503 = vmatpush.msra.mxu0 %v481
    %504 = vmatpush.msra.mxu0 %v480
    %505 = vmatpush.msra.mxu0 %v479
    %506 = vmatpush.msra.mxu0 %v478
    %507 = vmatmul.f32.gmra.mxu0 %v489
    %v508 = vpop.f32.mrf.mxu0
    %v509 = vadd.f32 %v487, %v508
    %510 = vdwg.mxu0
    %vm511 = vcmp.lt.s32.totalorder %v75, 32
    %v512 = vtanh.pop %v509
    %v513 = vmax.f32 %v509, 0.0
    %v514 = vsel %vm511, %v512, %v513
    %v515 = vld [vmem:[#allocation7 + $0x80] sm:$0xff]
    %v516 = vld [vmem:[#allocation7 + $0x88] sm:$0xff]
    %v517 = vld [vmem:[#allocation7 + $0x90] sm:$0xff]
    %v518 = vld [vmem:[#allocation7 + $0x98] sm:$0xff]
    %v519 = vld [vmem:[#allocation7 + $0xa0] sm:$0xff]
    %v520 = vld [vmem:[#allocation7 + $0xa8] sm:$0xff]
    %v521 = vld [vmem:[#allocation7 + $0xb0] sm:$0xff]
    %v522 = vld [vmem:[#allocation7 + $0xb8] sm:$0xff]
    %v523 = vld [vmem:[#allocation7 + $0xc0] sm:$0xff]
    %v524 = vld [vmem:[#allocation7 + $0xc8] sm:$0xff]
    %v525 = vld [vmem:[#allocation7 + $0xd0] sm:$0xff]
    %v526 = vld [vmem:[#allocation7 + $0xd8] sm:$0xff]
    %v527 = vld [vmem:[#allocation7 + $0x101] sm:$0x1]
    %v528 = vperm.slane %v527, 0
    %vm529 = vcmask 785408
    %v531 = vsel %vm529, %v514, 0
    %533 = vmatpush.msra.mxu0 0.0
    %534 = vmatpush.msra.mxu0 0.0
    %535 = vmatpush.msra.mxu0 0.0
    %536 = vmatpush.msra.mxu0 0.0
    %537 = vmatpush.msra.mxu0 %v526
    %538 = vmatpush.msra.mxu0 %v525
    %539 = vmatpush.msra.mxu0 %v524
    %540 = vmatpush.msra.mxu0 %v523
    %541 = vmatpush.msra.mxu0 %v522
    %542 = vmatpush.msra.mxu0 %v521
    %543 = vmatpush.msra.mxu0 %v520
    %544 = vmatpush.msra.mxu0 %v519
    %545 = vmatpush.msra.mxu0 %v518
    %546 = vmatpush.msra.mxu0 %v517
    %547 = vmatpush.msra.mxu0 %v516
    %548 = vmatpush.msra.mxu0 %v515
    %549 = vmatmul.f32.gmra.mxu0 %v531
    %v550 = vpop.f32.mrf.mxu0
    %v551 = vadd.f32 %v528, %v550
    %552 = vdwg.mxu0
    %v553 = vld [vmem:[#allocation7 + $0x102] sm:$0x1]
    %v554 = vperm.slane %v553, 0
    %v555 = vmul.f32 %v554, %v58
    %v556 = vsub.f32 0.0, %v551
    %v557 = vmax.f32 %v556, 0.0
    %v558 = vand.u32 2147483647, %v556
    %v559 = vsub.f32 0.0, %v558
    %v560 = vmul.f32 %v559, 1.442695
    %v561 = vpow.pop %v560
    %v562 = vadd.f32 %v561, 1.0
    %v563 = vlog2.pop %v562
    %v564 = vmul.f32 %v563, 0.6931472
    %v565 = vadd.f32 %v557, %v564
    %v567 = vrot.slane %v565, 4
    %v569 = vmul.f32 %v555, %v567
    %v570 = vsub.f32 1.0, %v58
    %v571 = vmax.f32 %v551, 0.0
    %v572 = vand.u32 2147483647, %v551
    %v573 = vsub.f32 0.0, %v572
    %v574 = vmul.f32 %v573, 1.442695
    %v575 = vpow.pop %v574
    %v576 = vadd.f32 %v575, 1.0
    %v577 = vlog2.pop %v576
    %v578 = vmul.f32 %v577, 0.6931472
    %v579 = vadd.f32 %v571, %v578
    %v581 = vrot.slane %v579, 4
    %v583 = vmul.f32 %v570, %v581
    %v584 = vadd.f32 %v569, %v583
    %v586 = vrot.slane %v584, 4
    %vm588 = vcmask 25600
    %v589 = vsel %vm588, %v586, 0.0
    %590 = vadd.xlane.f32.xlu0 %v589
    %v591 = vpop.xlane.xlu0 %590
    %v592 = vrot.slane %v591, 4
    %v593 = vadd.f32 %v591, %v592
    %v594 = vrot.slane %v593, 2
    %v595 = vadd.f32 %v593, %v594
    %v596 = vrot.slane %v595, 1
    %v597 = vadd.f32 %v595, %v596
    %s598 = vtos %v597
    %v599 = vstv %s598
    %v600 = vrcp.pop 8.0
    %v601 = vmul.f32 8.0, %v600
    %v602 = vsub.f32 1.0, %v601
    %v603 = vmul.f32 %v600, %v602
    %v604 = vadd.f32 %v600, %v603
    %vm605 = vweird.f32 %v600
    %v606 = vsel %vm605, %v600, %v604
    %v607 = vmul.f32 %v599, %v606
    %608 = vst [vmem:[#allocation8] sm:$0xff] 0.0
    %609 = vst.msk [vmem:[#allocation8] sm:$0x3] %vm588, %v551
    %vm610 = vcmask 0
    %611 = vst.msk [vmem:[#allocation8 + $0x4] sm:$0x1] %vm610, %v607
    // Predicated region
    $region26: #{tpu_custom_call.1} parent=1 // pred_check
      _
    $region27: #{tpu_custom_call.1} parent=1 // pred_check_branch
      %613 = sbr.rel (0) target = $region29
    $region28: #{tpu_custom_call.1} parent=1 // pred_region
      %615 = vsyncadd [#allocation4], 0
      %s617 = sshll.u32 [#allocation8], 4
      %s618 = int_to_ptr.vmem [resolvable:$true] %s617
      %s619 = sshll.u32 %s3, 4
      %s620 = int_to_ptr.hbm [resolvable:$true] %s619
      %622 = dma.vmem_to_hbm [thread:$0]  %s618, 128, %s620, [#allocation4]
    $region29: #{tpu_custom_call.1} parent=1 // pred_fallthru
      _
    // Predicated region
    $region30: #{tpu_custom_call.1} parent=1 // pred_check
      _
    $region31: #{tpu_custom_call.1} parent=1 // pred_check_branch
      %624 = sbr.rel (0) target = $region33
    $region32: #{tpu_custom_call.1} parent=1 // pred_region
      %626 = dma.done [#allocation4], 128
    $region33: #{tpu_custom_call.1} parent=1 // pred_fallthru
      _
    %627 = vsyncpa [#allocation3], 1
    %628 = vsyncpa [#allocation6], 1
    %629 = vsyncpa [#allocation4], 1

</llo_original>
